<compile_context>
chip_gen: v7x
topology: tpu7x:2x2x1
jax: 0.10.0
libtpu: 0.0.40
codegen_flags: <defaults>
</compile_context>

<pallas_src>
import functools

import jax
import jax.numpy as jnp
from jax.experimental import pallas as pl
from jax.experimental.pallas import tpu as pltpu


def _round_up(x, m):
    return (x + m - 1) // m * m


def _sublane_tile(dtype):
    # Min second-minor tile: 8 for 32-bit, 16 for bf16, 32 for int8/fp8.
    return max(8, 32 // jnp.dtype(dtype).itemsize)


def _device_kind():
    try:
        return jax.devices()[0].device_kind.lower()
    except Exception:
        return ""


def _target_block_bytes(kind):
    # HBM-streaming block size target per generation (amortize ~0.35us/step).
    if "v7" in kind:
        return 8 << 20
    if "v6" in kind:
        return 4 << 20
    return 2 << 20  # v5e / unknown


def _bias_add_kernel(b_ref, x_ref, o_ref, *, rb, resident_bias):
    # b_ref: resident (padded_rows, 1) bias column (sliced per row-block) or a
    #        per-step (rb, 1) column. x_ref / o_ref: (rb, cb) lane-dense slab.
    if resident_bias:
        start = pl.multiple_of(pl.program_id(0) * rb, rb)
        b = b_ref[pl.ds(start, rb), :]
    else:
        b = b_ref[...]
    o_ref[...] = x_ref[...] + b


def bias_forward(x, bias, *, donate_x=False):
    """x: (N, C, H, W), bias: (C,) -> (N, C, H, W) == x + bias[None,:,None,None]."""
    N, C, H, W = x.shape
    assert bias.shape == (C,)
    dtype = x.dtype
    itemsize = jnp.dtype(dtype).itemsize
    tile = _sublane_tile(dtype)

    rows, hw = N * C, H * W
    total_bytes = rows * hw * itemsize

    kind = _device_kind()
    target_bytes = _target_block_bytes(kind)
    multi_tc = "v7" in kind  # 2 TensorCores per chip

    # ---- lane (last-dim) blocking: only if H*W is 128-divisible and huge ----
    cb = hw
    if hw % 128 == 0:
        max_cb = max(128, (target_bytes // (tile * itemsize)) // 128 * 128)
        cb = min(hw, max_cb)

    # ---- row blocking, aligned to the dtype's packed sublane tile ----
    rb = target_bytes // (cb * itemsize)
    rb = max(tile, rb // tile * tile)
    rb = min(rb, rows)

    grid_r = pl.cdiv(rows, rb)
    grid_c = pl.cdiv(hw, cb)

    # v7x: ensure mid-size tensors get >= 2 parallel steps so both TCs stream.
    if multi_tc and grid_r * grid_c == 1 and total_bytes > (4 << 20) and rows >= 2 * tile:
        rb = _round_up(pl.cdiv(rows, 2), tile)
        grid_r = pl.cdiv(rows, rb)

    padded_rows = grid_r * rb

    # One bias scalar per row (row n*C + c -> bias[c]); pad so in-kernel slices
    # of the resident copy never run past the end on the tail row-block.
    b_col = jnp.tile(bias.astype(dtype), N).reshape(rows, 1)
    if padded_rows != rows:
        b_col = jnp.pad(b_col, ((0, padded_rows - rows), (0, 0)))

    # Resident bias (single DMA, sliced per step) unless N*C is so large that
    # the lane-padded column would waste meaningful VMEM; then fall back to
    # per-row-block bias tiles.
    bias_vmem = _round_up(padded_rows, 32) * 128 * itemsize
    resident_bias = bias_vmem <= (2 << 20)
    if resident_bias:
        b_spec = pl.BlockSpec((padded_rows, 1), lambda i, j: (0, 0))
        bias_buf_bytes = bias_vmem
    else:
        b_spec = pl.BlockSpec((rb, 1), lambda i, j: (i, 0))
        bias_buf_bytes = 2 * _round_up(rb, 32) * 128 * itemsize

    # Right-sized scoped VMEM: 2x in-block + 2x out-block + bias + headroom.
    block_bytes = rb * cb * itemsize
    footprint = 4 * block_bytes + bias_buf_bytes
    vmem_limit = min(max(int(footprint * 1.25) + (1 << 20), 8 << 20), 56 << 20)

    x2 = x.reshape(rows, hw)
    kernel = functools.partial(_bias_add_kernel, rb=rb, resident_bias=resident_bias)

    out2 = pl.pallas_call(
        kernel,
        out_shape=jax.ShapeDtypeStruct((rows, hw), dtype),
        grid_spec=pltpu.PrefetchScalarGridSpec(
            num_scalar_prefetch=0,
            grid=(grid_r, grid_c),
            in_specs=[
                b_spec,                                        # bias column
                pl.BlockSpec((rb, cb), lambda i, j: (i, j)),   # data slab
            ],
            out_specs=pl.BlockSpec((rb, cb), lambda i, j: (i, j)),
        ),
        compiler_params=pltpu.CompilerParams(
            dimension_semantics=("parallel", "parallel"),
            vmem_limit_bytes=vmem_limit,
        ),
        # Alias x -> out only when the caller can donate x (avoids a second
        # full-size HBM buffer); same HBM read+write traffic either way.
        input_output_aliases={1: 0} if donate_x else {},
    )(b_col, x2)

    return out2.reshape(N, C, H, W)


if __name__ == "__main__":
    key = jax.random.PRNGKey(0)
    N, C, H, W = 2, 4, 16, 16

    k_x, k_b = jax.random.split(key)
    x = jax.random.normal(k_x, (N, C, H, W), dtype=jnp.float32)
    # nn.Parameter(torch.zeros(channels)) initializes to zeros; also test a
    # non-zero bias so the broadcast path is exercised.
    bias_zeros = jnp.zeros((C,), dtype=jnp.float32)
    bias_nonzero = jax.random.normal(k_b, (C,), dtype=jnp.float32)

    out0 = jax.block_until_ready(bias_forward(x, bias_zeros))
    out1 = jax.block_until_ready(bias_forward(x, bias_nonzero))

    ref0 = x + bias_zeros[None, :, None, None]
    ref1 = x + bias_nonzero[None, :, None, None]

    assert out0.shape == (N, C, H, W) and out0.dtype == x.dtype
    assert jnp.allclose(out0, ref0, atol=1e-6)
    assert jnp.allclose(out1, ref1, atol=1e-6)

    print("KERNEL_OK")
</pallas_src>

<mosaic_0001>
module attributes {stable_mosaic.version = 11 : i64} {
  func.func @_bias_add_kernel(%arg0: i32, %arg1: i32, %arg2: memref<8x1xf32, #tpu.memory_space<vmem>>, %arg3: memref<8x256xf32, #tpu.memory_space<vmem>>, %arg4: memref<8x256xf32, #tpu.memory_space<vmem>>) attributes {dimension_semantics = [#tpu.dimension_semantics<parallel>, #tpu.dimension_semantics<parallel>], iteration_bounds = array<i64: 1, 1>, scalar_prefetch = 0 : i64, scratch_operands = 0 : i64, tpu.core_type = #tpu.core_type<tc>, window_params = [{pipeline_mode = #tpu.pipeline_mode<synchronous>, transform_indices = @transform_0, window_bounds = array<i64: 8, 1>}, {transform_indices = @transform_1, window_bounds = array<i64: 8, 256>}, {transform_indices = @transform_2, window_bounds = array<i64: 8, 256>}]} {
    %c8_i32 = arith.constant 8 : i32
    %0 = arith.muli %arg0, %c8_i32 : i32
    %1 = tpu.assume_multiple %0, 8 : i32
    %2 = arith.index_cast %1 : i32 to index
    %c0 = arith.constant 0 : index
    %3 = vector.load %arg2[%2, %c0] : memref<8x1xf32, #tpu.memory_space<vmem>>, vector<8x1xf32>
    %c0_0 = arith.constant 0 : index
    %c0_1 = arith.constant 0 : index
    %4 = vector.load %arg3[%c0_0, %c0_1] : memref<8x256xf32, #tpu.memory_space<vmem>>, vector<8x256xf32>
    %5 = vector.broadcast %3 : vector<8x1xf32> to vector<8x256xf32>
    %6 = arith.addf %4, %5 : vector<8x256xf32>
    %c0_2 = arith.constant 0 : index
    %c0_3 = arith.constant 0 : index
    %7 = vector.load %arg4[%c0_2, %c0_3] : memref<8x256xf32, #tpu.memory_space<vmem>>, vector<8x256xf32>
    tpu.vector_store %arg4[%c0_2, %c0_3], %6 {strides = array<i32>} : memref<8x256xf32, #tpu.memory_space<vmem>>, vector<8x256xf32>,
    return
  }
  func.func @transform_0(%arg0: i32, %arg1: i32) -> (i32, i32) {
    %c0_i32 = arith.constant 0 : i32
    %c0_i32_0 = arith.constant 0 : i32
    %c0_i32_1 = arith.constant 0 : i32
    return %c0_i32, %c0_i32_0 : i32, i32
  }
  func.func @transform_1(%arg0: i32, %arg1: i32) -> (i32, i32) {
    %c0_i32 = arith.constant 0 : i32
    return %arg0, %arg1 : i32, i32
  }
  func.func @transform_2(%arg0: i32, %arg1: i32) -> (i32, i32) {
    %c0_i32 = arith.constant 0 : i32
    return %arg0, %arg1 : i32, i32
  }
}

</mosaic_0001>

<llo_original>
// kernel: tpu_custom_call.1
$region0: #{tpu_custom_call.1}
  #allocation0 [shape = 'u32[]', space=smem, size = 0x4, offset = 0x4, fixed_abs, tag = 'smem constant byte address 0x4 - core index']
  #allocation1 [shape = 'u32[144,128]{1,0:T(1,128)}', space=vmem, size = 0x12000, scoped, tag = 'internal scratch']
  %s0 = inlined_call_operand.vmem [shape: f32[8,1], index: 0, kind: input, shape index: {}]
  %s1 = inlined_call_operand.hbm [shape: f32[8,256], index: 1, kind: input, shape index: {}]
  %s2 = inlined_call_operand.hbm [shape: f32[8,256], index: 2, kind: output, shape index: {}]
  %s3 = sld [smem:[#allocation0]]
  $region22: #{tpu_custom_call.1} parent=0
    _
  %s5 = ssub.s32 1, %s3
  %s6 = scalar_select 0, %s5, %s3
  $region1: #{tpu_custom_call.1} parent=0
    #allocation2 [shape = 'u8[8192]{0}', space=vmem, size = 0x2000, scoped, tag = 'input window, operand 1, single buffered']
    #allocation3 [shape = 's32[1]{0}', space=sflag, size = 0x4, scoped, tag = 'scoped memory for tpu_custom_call.1']
    #allocation4 [shape = 's32[1]{0}', space=sflag, size = 0x4, scoped, tag = 'scoped memory for tpu_custom_call.1']
    #allocation5 [shape = 'u8[8192]{0}', space=vmem, size = 0x2000, scoped, tag = 'output window, operand 0, single buffered']
    %7 = vsyncpa [#allocation3], 0
    %8 = vsyncpa [#allocation4], 0
    // Predicated region
    $region2: #{tpu_custom_call.1} parent=1 // pred_check
      _
    $region3: #{tpu_custom_call.1} parent=1 // pred_check_branch
      %10 = sbr.rel (0) target = $region5
    $region4: #{tpu_custom_call.1} parent=1 // pred_region
      _
    $region5: #{tpu_custom_call.1} parent=1 // pred_fallthru
      _
    // Predicated region
    $region6: #{tpu_custom_call.1} parent=1 // pred_check
      _
    $region7: #{tpu_custom_call.1} parent=1 // pred_check_branch
      %12 = sbr.rel (0) target = $region9
    $region8: #{tpu_custom_call.1} parent=1 // pred_region
      %s14 = ssub.s32 256, 256
      %15 = vsyncadd [#allocation3], %s14
      %s17 = sshll.u32 [#allocation2], 4
      %s18 = int_to_ptr.vmem [resolvable:$true] %s17
      %20 = dma.hbm_to_vmem [thread:$0]  %s1, 256, %s18, [#allocation3]
    $region9: #{tpu_custom_call.1} parent=1 // pred_fallthru
      _
    // Predicated region
    $region10: #{tpu_custom_call.1} parent=1 // pred_check
      _
    $region11: #{tpu_custom_call.1} parent=1 // pred_check_branch
      %22 = sbr.rel (0) target = $region13
    $region12: #{tpu_custom_call.1} parent=1 // pred_region
      %23 = dma.done [#allocation3], 256
    $region13: #{tpu_custom_call.1} parent=1 // pred_fallthru
      _
    %s24 = smul.u32 0, 8
    %s25 = scalar_lea.vmem %s0, %s24
    %v26 = vld [vmem:[%s25] sm:$0xff]
    %v27 = vld [vmem:[#allocation2] sm:$0xff]
    %v28 = vld [vmem:[#allocation2 + $0x8] sm:$0xff]
    %30 = vset.pattern.permute.xlu0 0
    %31 = vperm.xlu0 %30, %v26
    %v32 = vpop.permute.xlu0 %31
    %v34 = vadd.f32 %v27, %v32
    %v35 = vadd.f32 %v28, %v32
    %36 = vst [vmem:[#allocation5] sm:$0xff] %v34
    %37 = vst [vmem:[#allocation5 + $0x8] sm:$0xff] %v35
    // Predicated region
    $region14: #{tpu_custom_call.1} parent=1 // pred_check
      _
    $region15: #{tpu_custom_call.1} parent=1 // pred_check_branch
      %39 = sbr.rel (0) target = $region17
    $region16: #{tpu_custom_call.1} parent=1 // pred_region
      %s41 = ssub.s32 256, 256
      %42 = vsyncadd [#allocation4], %s41
      %s44 = sshll.u32 [#allocation5], 4
      %s45 = int_to_ptr.vmem [resolvable:$true] %s44
      %47 = dma.vmem_to_hbm [thread:$0]  %s45, 256, %s2, [#allocation4]
    $region17: #{tpu_custom_call.1} parent=1 // pred_fallthru
      _
    // Predicated region
    $region18: #{tpu_custom_call.1} parent=1 // pred_check
      _
    $region19: #{tpu_custom_call.1} parent=1 // pred_check_branch
      %49 = sbr.rel (0) target = $region21
    $region20: #{tpu_custom_call.1} parent=1 // pred_region
      %50 = dma.done [#allocation4], 256
    $region21: #{tpu_custom_call.1} parent=1 // pred_fallthru
      _
    %51 = vsyncpa [#allocation3], 1
    %52 = vsyncpa [#allocation4], 1

</llo_original>
